<compile_context>
chip_gen: v7x
topology: tpu7x:2x2x1
jax: 0.10.0
libtpu: 0.0.40
codegen_flags: <defaults>
</compile_context>

<pallas_src>
import functools

import jax
import jax.numpy as jnp
from jax.experimental import pallas as pl
from jax.experimental.pallas import tpu as pltpu


def _round_up(x: int, m: int) -> int:
    return (x + m - 1) // m * m


def pfn_kernel(x_ref, wt_ref, b_ref, o_ref):
    # x_ref : (tn, P, Cin)   wt_ref: (Cin, Ch)   b_ref: (1, Ch)
    # o_ref : (tn, P, 2*Ch)
    tn, P, Cin = x_ref.shape
    Ch = wt_ref.shape[1]

    # Linear (bias=True) on the channel axis.  Merging only the leading
    # (tn, P) dims keeps the lane axis (Cin) untouched -> layout-preserving.
    x2d = x_ref[...].reshape(tn * P, Cin)
    y = jnp.dot(x2d, wt_ref[...], preferred_element_type=jnp.float32)
    y = jnp.maximum(y + b_ref[...], 0.0)            # bias + ReLU, (tn*P, Ch)
    y = y.reshape(tn, P, Ch)                        # leading-dim split only

    # torch.max(x, dim=1, keepdim=True)[0]  -> per-pillar max over points.
    y_max = jnp.max(y, axis=1, keepdims=True)       # (tn, 1, Ch)

    # torch.cat([x, x_repeat], dim=2) without materializing the concatenated
    # temporary: store the two channel halves directly.
    o_ref[:, :, :Ch] = y.astype(o_ref.dtype)
    o_ref[:, :, Ch:] = jnp.broadcast_to(y_max, (tn, P, Ch)).astype(o_ref.dtype)


@functools.partial(jax.jit, static_argnames=("tn", "vmem_limit_bytes"))
def pfn_layer(inputs, weight, bias, *, tn=512, vmem_limit_bytes=48 * 1024 * 1024):
    """PFNLayer forward (use_norm=False, last_layer=False).

    inputs: (N, P, Cin) f32   weight: (Ch, Cin)   bias: (Ch,)
    returns (N, P, 2*Ch) = [relu(linear(inputs)) | broadcast(max over points)].

    tn is the voxel tile per grid step.  At the default tn=512 the
    double-buffered, lane-padded VMEM blocks are ~32 MiB, which fits the
    48 MiB limit set below on all of v5e/v6e/v7x.  On v6e/v5e (128 MiB VMEM)
    tn can be pushed to ~1024 if vmem_limit_bytes is raised accordingly; on
    v7x (64 MiB VMEM) keep tn <= ~512.
    """
    N, P, Cin = inputs.shape
    Ch, Cin_w = weight.shape
    assert Cin_w == Cin, (Cin_w, Cin)

    # Clamp the tile for small inputs and pad N up to a multiple of the tile
    # (real PointPillars voxel counts won't divide a large tn).  Padded rows
    # are zeros -> finite outputs -> sliced off below.
    tn = max(8, min(tn, _round_up(N, 8)))
    n_pad = _round_up(N, tn)
    x = inputs
    if n_pad != N:
        x = jnp.pad(inputs, ((0, n_pad - N), (0, 0), (0, 0)))

    wt = weight.T                # (Cin, Ch): no in-kernel transpose needed
    b2d = bias.reshape(1, Ch)

    out = pl.pallas_call(
        pfn_kernel,
        out_shape=jax.ShapeDtypeStruct((n_pad, P, 2 * Ch), inputs.dtype),
        grid_spec=pltpu.PrefetchScalarGridSpec(
            num_scalar_prefetch=0,
            grid=(n_pad // tn,),
            in_specs=[
                # Voxel tile; last two dims equal the full array dims -> OK.
                pl.BlockSpec((tn, P, Cin), lambda i: (i, 0, 0)),
                # Full (transposed) weight / bias resident every step.
                pl.BlockSpec((Cin, Ch), lambda i: (0, 0)),
                pl.BlockSpec((1, Ch), lambda i: (0, 0)),
            ],
            out_specs=pl.BlockSpec((tn, P, 2 * Ch), lambda i: (i, 0, 0)),
        ),
        compiler_params=pltpu.CompilerParams(
            dimension_semantics=("parallel",),
            vmem_limit_bytes=vmem_limit_bytes,
        ),
    )(x, wt, b2d)

    return out[:N] if n_pad != N else out


def pfn_reference(inputs, weight, bias):
    # Pure-JAX reference mirroring the PyTorch forward (use_norm=False, not last).
    x = jnp.einsum("npc,oc->npo", inputs, weight) + bias
    x = jnp.maximum(x, 0.0)
    x_max = jnp.max(x, axis=1, keepdims=True)
    x_rep = jnp.broadcast_to(x_max, x.shape)
    return jnp.concatenate([x, x_rep], axis=2)


if __name__ == "__main__":
    # Small shapes consistent with the module:
    #   N voxels = 36 (deliberately NOT a multiple of the tile, to exercise
    #   the padding path), P points per pillar = 32, in_channels = 8,
    #   out_channels = 64 -> half = 32 (last_layer=False).
    N, P, Cin = 36, 32, 8
    Cout = 64
    Ch = Cout // 2

    key = jax.random.PRNGKey(0)
    k_in, k_w, k_b = jax.random.split(key, 3)

    inputs = jax.random.normal(k_in, (N, P, Cin), dtype=jnp.float32)
    # Deterministic synthetic parameters (nn.Linear(in_channels, Ch, bias=True)).
    weight = jax.random.normal(k_w, (Ch, Cin), dtype=jnp.float32) * 0.1
    bias = jax.random.normal(k_b, (Ch,), dtype=jnp.float32) * 0.1

    # Small tile so the demo exercises a multi-step grid (36 -> padded 48, 3 steps).
    out = pfn_layer(inputs, weight, bias, tn=16)
    out = jax.block_until_ready(out)

    ref = pfn_reference(inputs, weight, bias)
    assert out.shape == (N, P, 2 * Ch), out.shape
    assert jnp.allclose(out, ref, atol=1e-5, rtol=1e-5), \
        float(jnp.max(jnp.abs(out - ref)))

    print("KERNEL_OK")
</pallas_src>

<mosaic_0001>
module attributes {stable_mosaic.version = 11 : i64} {
  func.func @pfn_kernel(%arg0: i32, %arg1: memref<16x32x8xf32, #tpu.memory_space<vmem>>, %arg2: memref<8x32xf32, #tpu.memory_space<vmem>>, %arg3: memref<1x32xf32, #tpu.memory_space<vmem>>, %arg4: memref<16x32x64xf32, #tpu.memory_space<vmem>>) attributes {dimension_semantics = [#tpu.dimension_semantics<parallel>], iteration_bounds = array<i64: 3>, scalar_prefetch = 0 : i64, scratch_operands = 0 : i64, tpu.core_type = #tpu.core_type<tc>, window_params = [{transform_indices = @transform_0, window_bounds = array<i64: 16, 32, 8>}, {pipeline_mode = #tpu.pipeline_mode<synchronous>, transform_indices = @transform_1, window_bounds = array<i64: 8, 32>}, {pipeline_mode = #tpu.pipeline_mode<synchronous>, transform_indices = @transform_2, window_bounds = array<i64: 1, 32>}, {transform_indices = @transform_3, window_bounds = array<i64: 16, 32, 64>}]} {
    %c0 = arith.constant 0 : index
    %c0_0 = arith.constant 0 : index
    %c0_1 = arith.constant 0 : index
    %0 = vector.load %arg1[%c0, %c0_0, %c0_1] : memref<16x32x8xf32, #tpu.memory_space<vmem>>, vector<16x32x8xf32>
    %1 = vector.shape_cast %0 : vector<16x32x8xf32> to vector<512x8xf32>
    %c0_2 = arith.constant 0 : index
    %c0_3 = arith.constant 0 : index
    %2 = vector.load %arg2[%c0_2, %c0_3] : memref<8x32xf32, #tpu.memory_space<vmem>>, vector<8x32xf32>
    %cst = arith.constant dense<0.000000e+00> : vector<512x32xf32>
    %3 = tpu.matmul %1, %2, %cst {dimension_numbers = #tpu.dot_dimension_numbers<[1], [0], [0], [1], [0, 0, 1, 1], [], []>} : vector<512x8xf32>, vector<8x32xf32>, vector<512x32xf32> -> vector<512x32xf32>
    %c0_4 = arith.constant 0 : index
    %c0_5 = arith.constant 0 : index
    %4 = vector.load %arg3[%c0_4, %c0_5] : memref<1x32xf32, #tpu.memory_space<vmem>>, vector<1x32xf32>
    %5 = vector.broadcast %4 : vector<1x32xf32> to vector<512x32xf32>
    %6 = arith.addf %3, %5 : vector<512x32xf32>
    %cst_6 = arith.constant 0.000000e+00 : f32
    %7 = vector.broadcast %cst_6 : f32 to vector<512x32xf32>
    %8 = arith.maximumf %6, %7 : vector<512x32xf32>
    %9 = vector.shape_cast %8 : vector<512x32xf32> to vector<16x32x32xf32>
    %cst_7 = arith.constant dense<0xFF800000> : vector<16x32xf32>
    %10 = vector.multi_reduction <maximumf>, %9, %cst_7 [1] : vector<16x32x32xf32> to vector<16x32xf32>
    %11 = vector.shape_cast %10 : vector<16x32xf32> to vector<16x1x32xf32>
    %c0_8 = arith.constant 0 : index
    %c0_9 = arith.constant 0 : index
    %c0_10 = arith.constant 0 : index
    %12 = vector.load %arg4[%c0_8, %c0_9, %c0_10] : memref<16x32x64xf32, #tpu.memory_space<vmem>>, vector<16x32x32xf32>
    tpu.vector_store %arg4[%c0_8, %c0_9, %c0_10], %9 {strides = array<i32>} : memref<16x32x64xf32, #tpu.memory_space<vmem>>, vector<16x32x32xf32>,
    %13 = vector.shape_cast %11 : vector<16x1x32xf32> to vector<16x1x32xf32>
    %14 = vector.broadcast %13 : vector<16x1x32xf32> to vector<16x32x32xf32>
    %c0_11 = arith.constant 0 : index
    %c0_12 = arith.constant 0 : index
    %c32 = arith.constant 32 : index
    %15 = vector.load %arg4[%c0_11, %c0_12, %c32] : memref<16x32x64xf32, #tpu.memory_space<vmem>>, vector<16x32x32xf32>
    tpu.vector_store %arg4[%c0_11, %c0_12, %c32], %14 {strides = array<i32>} : memref<16x32x64xf32, #tpu.memory_space<vmem>>, vector<16x32x32xf32>,
    return
  }
  func.func @transform_0(%arg0: i32) -> (i32, i32, i32) {
    %c0_i32 = arith.constant 0 : i32
    %c0_i32_0 = arith.constant 0 : i32
    %c0_i32_1 = arith.constant 0 : i32
    return %arg0, %c0_i32, %c0_i32_0 : i32, i32, i32
  }
  func.func @transform_1(%arg0: i32) -> (i32, i32) {
    %c0_i32 = arith.constant 0 : i32
    %c0_i32_0 = arith.constant 0 : i32
    %c0_i32_1 = arith.constant 0 : i32
    return %c0_i32, %c0_i32_0 : i32, i32
  }
  func.func @transform_2(%arg0: i32) -> (i32, i32) {
    %c0_i32 = arith.constant 0 : i32
    %c0_i32_0 = arith.constant 0 : i32
    %c0_i32_1 = arith.constant 0 : i32
    return %c0_i32, %c0_i32_0 : i32, i32
  }
  func.func @transform_3(%arg0: i32) -> (i32, i32, i32) {
    %c0_i32 = arith.constant 0 : i32
    %c0_i32_0 = arith.constant 0 : i32
    %c0_i32_1 = arith.constant 0 : i32
    return %arg0, %c0_i32, %c0_i32_0 : i32, i32, i32
  }
}

</mosaic_0001>

<llo_original>
// kernel: pfn_layer.1
$region0: #{pfn_layer.1}
  #allocation0 [shape = 'u32[]', space=smem, size = 0x4, offset = 0x4, fixed_abs, tag = 'smem constant byte address 0x4 - core index']
  #allocation1 [shape = 'u32[144,128]{1,0:T(1,128)}', space=vmem, size = 0x12000, scoped, tag = 'internal scratch']
  %s0 = inlined_call_operand.vmem [shape: f32[48,32,8], index: 0, kind: input, shape index: {}]
  %s1 = inlined_call_operand.vmem [shape: f32[8,32], index: 1, kind: input, shape index: {}]
  %s2 = inlined_call_operand.vmem [shape: f32[1,32], index: 2, kind: input, shape index: {}]
  %s3 = inlined_call_operand.vmem [shape: f32[48,32,64], index: 3, kind: output, shape index: {}]
  %s4 = sld [smem:[#allocation0]]
  $region45: #{pfn_layer.1} parent=0
    _
  %s6 = ssub.s32 1, %s4
  %s7 = scalar_select 0, %s6, %s4
  loop: start=0, step=1, limit=5
  $region2: #{pfn_layer.1} parent=0 // loop_pre_header
    _
  $region3: #{pfn_layer.1} parent=0 // loop_header
    %s9 = sphi 0, %s13
    %p10 = scmp.ge.s32.totalorder %s9, 5
    %s19 = sphi 0, %s21
    %s22 = sphi 0, %s19
    %s23 = sphi 0, %s22
    %s39 = sphi 0, %s23
    %s43 = sphi 0, %s43
    %s45 = sphi 0, %s43
    %s46 = sphi 0, %s45
    %s60 = sphi 0, %s46
    %s64 = sphi 0, %s64
    %s66 = sphi 0, %s64
    %s67 = sphi 0, %s66
    %s81 = sphi 0, %s67
    %s87 = sphi 0, %s89
    %s90 = sphi 0, %s87
    %s91 = sphi 0, %s90
    %s107 = sphi 0, %s91
  $region4: #{pfn_layer.1} parent=0 // loop_header_branch
    %12 = sbr.rel (%p10) target = $region8
  $region5: #{pfn_layer.1} parent=0 // loop_body
    %s14 = ssub.s32 %s9, 1
    %s15 = ssub.s32 %s9, 2
    %s16 = sadd.s32 %s9, 1
    %s17 = ssub.s32 %s9, %s16
    %p18 = scmp.eq.s32.totalorder %s17, 0
    %s20 = sadd.s32 %s19, 1
    %s21 = scalar_select %p18, %s19, %s20
    %p24 = pneg %p18
    %p25 = scmp.eq.s32.totalorder %s9, 2
    %p26 = por %p24, %p25
    %p27 = scmp.ne.s32.totalorder %s19, %s22
    %p28 = scmp.eq.s32.totalorder %s9, 0
    %p29 = por %p27, %p28
    %p30 = scmp.ne.s32.totalorder %s19, %s22
    %p31 = scmp.eq.s32.totalorder %s14, 2
    %p32 = por %p30, %p31
    %p33 = scmp.ne.s32.totalorder %s22, %s23
    %p34 = scmp.eq.s32.totalorder %s14, 0
    %p35 = por %p33, %p34
    %p36 = scmp.ne.s32.totalorder %s22, %s23
    %p37 = scmp.eq.s32.totalorder %s15, 2
    %p38 = por %p36, %p37
    %p40 = scmp.ne.s32.totalorder %s23, %s39
    %p41 = scmp.eq.s32.totalorder %s15, 0
    %p42 = por %p40, %p41
    %s44 = sadd.s32 %s43, 1
    %p47 = scmp.eq.s32.totalorder %s9, 2
    %p48 = scmp.ne.s32.totalorder %s43, %s45
    %p49 = scmp.eq.s32.totalorder %s9, 0
    %p50 = por %p48, %p49
    %p51 = scmp.ne.s32.totalorder %s43, %s45
    %p52 = scmp.eq.s32.totalorder %s14, 2
    %p53 = por %p51, %p52
    %p54 = scmp.ne.s32.totalorder %s45, %s46
    %p55 = scmp.eq.s32.totalorder %s14, 0
    %p56 = por %p54, %p55
    %p57 = scmp.ne.s32.totalorder %s45, %s46
    %p58 = scmp.eq.s32.totalorder %s15, 2
    %p59 = por %p57, %p58
    %p61 = scmp.ne.s32.totalorder %s46, %s60
    %p62 = scmp.eq.s32.totalorder %s15, 0
    %p63 = por %p61, %p62
    %s65 = sadd.s32 %s64, 1
    %p68 = scmp.eq.s32.totalorder %s9, 2
    %p69 = scmp.ne.s32.totalorder %s64, %s66
    %p70 = scmp.eq.s32.totalorder %s9, 0
    %p71 = por %p69, %p70
    %p72 = scmp.ne.s32.totalorder %s64, %s66
    %p73 = scmp.eq.s32.totalorder %s14, 2
    %p74 = por %p72, %p73
    %p75 = scmp.ne.s32.totalorder %s66, %s67
    %p76 = scmp.eq.s32.totalorder %s14, 0
    %p77 = por %p75, %p76
    %p78 = scmp.ne.s32.totalorder %s66, %s67
    %p79 = scmp.eq.s32.totalorder %s15, 2
    %p80 = por %p78, %p79
    %p82 = scmp.ne.s32.totalorder %s67, %s81
    %p83 = scmp.eq.s32.totalorder %s15, 0
    %p84 = por %p82, %p83
    %s85 = ssub.s32 %s9, %s16
    %p86 = scmp.eq.s32.totalorder %s85, 0
    %s88 = sadd.s32 %s87, 1
    %s89 = scalar_select %p86, %s87, %s88
    %p92 = pneg %p86
    %p93 = scmp.eq.s32.totalorder %s9, 2
    %p94 = por %p92, %p93
    %p95 = scmp.ne.s32.totalorder %s87, %s90
    %p96 = scmp.eq.s32.totalorder %s9, 0
    %p97 = por %p95, %p96
    %p98 = scmp.ne.s32.totalorder %s87, %s90
    %p99 = scmp.eq.s32.totalorder %s14, 2
    %p100 = por %p98, %p99
    %p101 = scmp.ne.s32.totalorder %s90, %s91
    %p102 = scmp.eq.s32.totalorder %s14, 0
    %p103 = por %p101, %p102
    %p104 = scmp.ne.s32.totalorder %s90, %s91
    %p105 = scmp.eq.s32.totalorder %s15, 2
    %p106 = por %p104, %p105
    %p108 = scmp.ne.s32.totalorder %s91, %s107
    %p109 = scmp.eq.s32.totalorder %s15, 0
    %p110 = por %p108, %p109
    %p111 = scmp.le.s32.totalorder 1, %s9
    %p112 = scmp.lt.s32.totalorder %s9, 4
    %p113 = pnand %p111, %p112
    %p114 = pneg %p113
    // Predicated region
    $region9: #{pfn_layer.1} parent=5 // pred_check
      _
    $region10: #{pfn_layer.1} parent=5 // pred_check_branch
      %116 = sbr.rel (%p113) target = $region12
    $region11: #{pfn_layer.1} parent=5 // pred_region
      %s117 = ssub.s32 %s9, 1
      // Predicated region
      $region13: #{pfn_layer.1} parent=11 // pred_check
        %p118 = pneg %p56
      $region14: #{pfn_layer.1} parent=11 // pred_check_branch
        %120 = sbr.rel (%p118) target = $region16
      $region15: #{pfn_layer.1} parent=11 // pred_region
        _
      $region16: #{pfn_layer.1} parent=11 // pred_fallthru
        _
      // Predicated region
      $region17: #{pfn_layer.1} parent=11 // pred_check
        %p121 = pneg %p77
      $region18: #{pfn_layer.1} parent=11 // pred_check_branch
        %123 = sbr.rel (%p121) target = $region20
      $region19: #{pfn_layer.1} parent=11 // pred_region
        _
      $region20: #{pfn_layer.1} parent=11 // pred_fallthru
        _
    $region12: #{pfn_layer.1} parent=5 // pred_fallthru
      _
    %p124 = scmp.lt.s32.totalorder %s9, 3
    // Predicated region
    $region21: #{pfn_layer.1} parent=5 // pred_check
      %p125 = pneg %p124
    $region22: #{pfn_layer.1} parent=5 // pred_check_branch
      %127 = sbr.rel (%p125) target = $region24
    $region23: #{pfn_layer.1} parent=5 // pred_region
      // Predicated region
      $region25: #{pfn_layer.1} parent=23 // pred_check
        %p128 = pneg %p29
      $region26: #{pfn_layer.1} parent=23 // pred_check_branch
        %130 = sbr.rel (%p128) target = $region28
      $region27: #{pfn_layer.1} parent=23 // pred_region
        %s131 = smul.u32 16, %s9
        %p132 = scmp.lt.s32.totalorder %s131, 47
        %s133 = scalar_select %p132, %s131, 47
        %s134 = smul.addr %s133, 4
        %s135 = smul.addr %s134, 8
        %s136 = scalar_lea.vmem %s0, %s135
        %s137 = smul.u32 16, %s9
      $region28: #{pfn_layer.1} parent=23 // pred_fallthru
        _
    $region24: #{pfn_layer.1} parent=5 // pred_fallthru
      _
    %p138 = scmp.le.s32.totalorder 1, %s9
    %p139 = scmp.lt.s32.totalorder %s9, 4
    %p140 = pnand %p138, %p139
    %p141 = pneg %p140
    // Predicated region
    $region29: #{pfn_layer.1} parent=5 // pred_check
      _
    $region30: #{pfn_layer.1} parent=5 // pred_check_branch
      %143 = sbr.rel (%p140) target = $region32
    $region31: #{pfn_layer.1} parent=5 // pred_region
      %s144 = ssub.s32 %s9, 1
      %s145 = smul.u32 16, %s14
      %p146 = scmp.lt.s32.totalorder %s145, 47
      %s147 = scalar_select %p146, %s145, 47
      %s148 = smul.addr %s147, 4
      %s149 = smul.addr %s148, 8
      %s150 = scalar_lea.vmem %s0, %s149
      %p151 = pneg %p35
      %p152 = pneg %p32
      %p153 = pneg %p56
      %p154 = pneg %p53
      %p155 = pneg %p77
      %p156 = pneg %p74
      %p157 = pneg %p103
      %p158 = pneg %p100
      %s159 = smul.u32 16, %s14
      %p160 = scmp.lt.s32.totalorder %s159, 47
      %s161 = scalar_select %p160, %s159, 47
      %s162 = smul.addr %s161, 4
      %s163 = smul.addr %s162, 8
      %s164 = scalar_lea.vmem %s3, %s163
      %s165 = smul.u32 16, %s14
      %p166 = scmp.lt.s32.totalorder %s165, 47
      %s167 = scalar_select %p166, %s165, 47
      %s168 = smul.addr %s167, 4
      %s169 = smul.addr %s168, 8
      %s170 = scalar_lea.vmem %s0, %s169
      %s171 = smul.u32 16, %s14
      %s172 = smul.u32 16, %s14
      %p173 = scmp.lt.s32.totalorder %s172, 47
      %s174 = scalar_select %p173, %s172, 47
      %s175 = smul.addr %s174, 4
      %s176 = smul.addr %s175, 8
      %s177 = scalar_lea.vmem %s3, %s176
      %s178 = smul.u32 16, %s14
      %v179 = vld [vmem:[%s170] sm:$0xff]
      %v180 = vld [vmem:[%s170 + $0x8] sm:$0xff]
      %v181 = vld [vmem:[%s170 + $0x10] sm:$0xff]
      %v182 = vld [vmem:[%s170 + $0x18] sm:$0xff]
      %v183 = vld [vmem:[%s170 + $0x20] sm:$0xff]
      %v184 = vld [vmem:[%s170 + $0x28] sm:$0xff]
      %v185 = vld [vmem:[%s170 + $0x30] sm:$0xff]
      %v186 = vld [vmem:[%s170 + $0x38] sm:$0xff]
      %v187 = vld [vmem:[%s170 + $0x40] sm:$0xff]
      %v188 = vld [vmem:[%s170 + $0x48] sm:$0xff]
      %v189 = vld [vmem:[%s170 + $0x50] sm:$0xff]
      %v190 = vld [vmem:[%s170 + $0x58] sm:$0xff]
      %v191 = vld [vmem:[%s170 + $0x60] sm:$0xff]
      %v192 = vld [vmem:[%s170 + $0x68] sm:$0xff]
      %v193 = vld [vmem:[%s170 + $0x70] sm:$0xff]
      %v194 = vld [vmem:[%s170 + $0x78] sm:$0xff]
      %v195 = vld [vmem:[%s170 + $0x80] sm:$0xff]
      %v196 = vld [vmem:[%s170 + $0x88] sm:$0xff]
      %v197 = vld [vmem:[%s170 + $0x90] sm:$0xff]
      %v198 = vld [vmem:[%s170 + $0x98] sm:$0xff]
      %v199 = vld [vmem:[%s170 + $0xa0] sm:$0xff]
      %v200 = vld [vmem:[%s170 + $0xa8] sm:$0xff]
      %v201 = vld [vmem:[%s170 + $0xb0] sm:$0xff]
      %v202 = vld [vmem:[%s170 + $0xb8] sm:$0xff]
      %v203 = vld [vmem:[%s170 + $0xc0] sm:$0xff]
      %v204 = vld [vmem:[%s170 + $0xc8] sm:$0xff]
      %v205 = vld [vmem:[%s170 + $0xd0] sm:$0xff]
      %v206 = vld [vmem:[%s170 + $0xd8] sm:$0xff]
      %v207 = vld [vmem:[%s170 + $0xe0] sm:$0xff]
      %v208 = vld [vmem:[%s170 + $0xe8] sm:$0xff]
      %v209 = vld [vmem:[%s170 + $0xf0] sm:$0xff]
      %v210 = vld [vmem:[%s170 + $0xf8] sm:$0xff]
      %v211 = vld [vmem:[%s170 + $0x100] sm:$0xff]
      %v212 = vld [vmem:[%s170 + $0x108] sm:$0xff]
      %v213 = vld [vmem:[%s170 + $0x110] sm:$0xff]
      %v214 = vld [vmem:[%s170 + $0x118] sm:$0xff]
      %v215 = vld [vmem:[%s170 + $0x120] sm:$0xff]
      %v216 = vld [vmem:[%s170 + $0x128] sm:$0xff]
      %v217 = vld [vmem:[%s170 + $0x130] sm:$0xff]
      %v218 = vld [vmem:[%s170 + $0x138] sm:$0xff]
      %v219 = vld [vmem:[%s170 + $0x140] sm:$0xff]
      %v220 = vld [vmem:[%s170 + $0x148] sm:$0xff]
      %v221 = vld [vmem:[%s170 + $0x150] sm:$0xff]
      %v222 = vld [vmem:[%s170 + $0x158] sm:$0xff]
      %v223 = vld [vmem:[%s170 + $0x160] sm:$0xff]
      %v224 = vld [vmem:[%s170 + $0x168] sm:$0xff]
      %v225 = vld [vmem:[%s170 + $0x170] sm:$0xff]
      %v226 = vld [vmem:[%s170 + $0x178] sm:$0xff]
      %v227 = vld [vmem:[%s170 + $0x180] sm:$0xff]
      %v228 = vld [vmem:[%s170 + $0x188] sm:$0xff]
      %v229 = vld [vmem:[%s170 + $0x190] sm:$0xff]
      %v230 = vld [vmem:[%s170 + $0x198] sm:$0xff]
      %v231 = vld [vmem:[%s170 + $0x1a0] sm:$0xff]
      %v232 = vld [vmem:[%s170 + $0x1a8] sm:$0xff]
      %v233 = vld [vmem:[%s170 + $0x1b0] sm:$0xff]
      %v234 = vld [vmem:[%s170 + $0x1b8] sm:$0xff]
      %v235 = vld [vmem:[%s170 + $0x1c0] sm:$0xff]
      %v236 = vld [vmem:[%s170 + $0x1c8] sm:$0xff]
      %v237 = vld [vmem:[%s170 + $0x1d0] sm:$0xff]
      %v238 = vld [vmem:[%s170 + $0x1d8] sm:$0xff]
      %v239 = vld [vmem:[%s170 + $0x1e0] sm:$0xff]
      %v240 = vld [vmem:[%s170 + $0x1e8] sm:$0xff]
      %v241 = vld [vmem:[%s170 + $0x1f0] sm:$0xff]
      %v242 = vld [vmem:[%s170 + $0x1f8] sm:$0xff]
      %v243 = vld [vmem:[%s1] sm:$0xff]
      %v244 = vld [vmem:[%s2] sm:$0x1]
      %v246 = vlaneseq
      %v247 = vshrl.u32 %v246, 7
      %v248 = vsub.s32 0, %v247
      %v249 = vrot.slane %v244, %v248
      %vm251 = vcmask 64512
      %v253 = vsel %vm251, %v179, 0
      %v256 = vsel %vm251, %v180, 0
      %v259 = vsel %vm251, %v181, 0
      %v262 = vsel %vm251, %v182, 0
      %v265 = vsel %vm251, %v183, 0
      %v268 = vsel %vm251, %v184, 0
      %v271 = vsel %vm251, %v185, 0
      %v274 = vsel %vm251, %v186, 0
      %v277 = vsel %vm251, %v187, 0
      %v280 = vsel %vm251, %v188, 0
      %v283 = vsel %vm251, %v189, 0
      %v286 = vsel %vm251, %v190, 0
      %v289 = vsel %vm251, %v191, 0
      %v292 = vsel %vm251, %v192, 0
      %v295 = vsel %vm251, %v193, 0
      %v298 = vsel %vm251, %v194, 0
      %v301 = vsel %vm251, %v195, 0
      %v304 = vsel %vm251, %v196, 0
      %v307 = vsel %vm251, %v197, 0
      %v310 = vsel %vm251, %v198, 0
      %v313 = vsel %vm251, %v199, 0
      %v316 = vsel %vm251, %v200, 0
      %v319 = vsel %vm251, %v201, 0
      %v322 = vsel %vm251, %v202, 0
      %v325 = vsel %vm251, %v203, 0
      %v328 = vsel %vm251, %v204, 0
      %v331 = vsel %vm251, %v205, 0
      %v334 = vsel %vm251, %v206, 0
      %v337 = vsel %vm251, %v207, 0
      %v340 = vsel %vm251, %v208, 0
      %v343 = vsel %vm251, %v209, 0
      %v346 = vsel %vm251, %v210, 0
      %v349 = vsel %vm251, %v211, 0
      %v352 = vsel %vm251, %v212, 0
      %v355 = vsel %vm251, %v213, 0
      %v358 = vsel %vm251, %v214, 0
      %v361 = vsel %vm251, %v215, 0
      %v364 = vsel %vm251, %v216, 0
      %v367 = vsel %vm251, %v217, 0
      %v370 = vsel %vm251, %v218, 0
      %v373 = vsel %vm251, %v219, 0
      %v376 = vsel %vm251, %v220, 0
      %v379 = vsel %vm251, %v221, 0
      %v382 = vsel %vm251, %v222, 0
      %v385 = vsel %vm251, %v223, 0
      %v388 = vsel %vm251, %v224, 0
      %v391 = vsel %vm251, %v225, 0
      %v394 = vsel %vm251, %v226, 0
      %v397 = vsel %vm251, %v227, 0
      %v400 = vsel %vm251, %v228, 0
      %v403 = vsel %vm251, %v229, 0
      %v406 = vsel %vm251, %v230, 0
      %v409 = vsel %vm251, %v231, 0
      %v412 = vsel %vm251, %v232, 0
      %v415 = vsel %vm251, %v233, 0
      %v418 = vsel %vm251, %v234, 0
      %v421 = vsel %vm251, %v235, 0
      %v424 = vsel %vm251, %v236, 0
      %v427 = vsel %vm251, %v237, 0
      %v430 = vsel %vm251, %v238, 0
      %v433 = vsel %vm251, %v239, 0
      %v436 = vsel %vm251, %v240, 0
      %v439 = vsel %vm251, %v241, 0
      %v442 = vsel %vm251, %v242, 0
      %444 = vmatprep.subr.mxu0 0.0
      %445 = vmatpush1.msra.mxu0 %v243
      %446 = vmatprep.subr.mxu0 0.0
      %447 = vmatpush1.msra.mxu0 0.0
      %448 = vmatprep.subr.mxu0 0.0
      %449 = vmatpush1.msra.mxu0 0.0
      %450 = vmatprep.subr.mxu0 0.0
      %451 = vmatpush1.msra.mxu0 0.0
      %452 = vmatprep.subr.mxu0 0.0
      %453 = vmatpush1.msra.mxu0 0.0
      %454 = vmatprep.subr.mxu0 0.0
      %455 = vmatpush1.msra.mxu0 0.0
      %456 = vmatprep.subr.mxu0 0.0
      %457 = vmatpush1.msra.mxu0 0.0
      %458 = vmatprep.subr.mxu0 0.0
      %459 = vmatpush1.msra.mxu0 0.0
      %460 = vmatprep.subr.mxu0 0.0
      %461 = vmatpush1.msra.mxu0 0.0
      %462 = vmatprep.subr.mxu0 0.0
      %463 = vmatpush1.msra.mxu0 0.0
      %464 = vmatprep.subr.mxu0 0.0
      %465 = vmatpush1.msra.mxu0 0.0
      %466 = vmatprep.subr.mxu0 0.0
      %467 = vmatpush1.msra.mxu0 0.0
      %468 = vmatprep.subr.mxu0 0.0
      %469 = vmatpush1.msra.mxu0 0.0
      %470 = vmatprep.subr.mxu0 0.0
      %471 = vmatpush1.msra.mxu0 0.0
      %472 = vmatprep.subr.mxu0 0.0
      %473 = vmatpush1.msra.mxu0 0.0
      %474 = vmatprep.subr.mxu0 0.0
      %475 = vmatpush1.msra.mxu0 0.0
      %476 = vmatprep.subr.mxu0 0.0
      %477 = vmatpush1.msra.mxu0 0.0
      %478 = vmatprep.subr.mxu0 0.0
      %479 = vmatpush1.msra.mxu0 0.0
      %480 = vmatprep.subr.mxu0 0.0
      %481 = vmatpush1.msra.mxu0 0.0
      %482 = vmatprep.subr.mxu0 0.0
      %483 = vmatpush1.msra.mxu0 0.0
      %484 = vmatprep.subr.mxu0 0.0
      %485 = vmatpush1.msra.mxu0 0.0
      %486 = vmatprep.subr.mxu0 0.0
      %487 = vmatpush1.msra.mxu0 0.0
      %488 = vmatprep.subr.mxu0 0.0
      %489 = vmatpush1.msra.mxu0 0.0
      %490 = vmatprep.subr.mxu0 0.0
      %491 = vmatpush1.msra.mxu0 0.0
      %492 = vmatprep.subr.mxu0 0.0
      %493 = vmatpush1.msra.mxu0 0.0
      %494 = vmatprep.subr.mxu0 0.0
      %495 = vmatpush1.msra.mxu0 0.0
      %496 = vmatprep.subr.mxu0 0.0
      %497 = vmatpush1.msra.mxu0 0.0
      %498 = vmatprep.subr.mxu0 0.0
      %499 = vmatpush1.msra.mxu0 0.0
      %500 = vmatprep.subr.mxu0 0.0
      %501 = vmatpush1.msra.mxu0 0.0
      %502 = vmatprep.subr.mxu0 0.0
      %503 = vmatpush1.msra.mxu0 0.0
      %504 = vmatprep.subr.mxu0 0.0
      %505 = vmatpush1.msra.mxu0 0.0
      %506 = vmatprep.subr.mxu0 0.0
      %507 = vmatpush1.msra.mxu0 0.0
      %508 = vmatprep.mubr.f32.mxu0 0.0
      %509 = vmatmul.mubr.f32.gmra.mrb[0].mxu0 %v253
      %v510 = vpop.f32.mrb[0].mxu0
      %v511 = vadd.f32 %v249, %v510
      %v512 = vpop.f32.mrb[0].mxu0
      %513 = vmatprep.mubr.f32.mxu0 0.0
      %514 = vmatmul.mubr.f32.gmra.mrb[0].mxu0 %v256
      %v515 = vpop.f32.mrb[0].mxu0
      %v516 = vadd.f32 %v249, %v515
      %v517 = vpop.f32.mrb[0].mxu0
      %518 = vmatprep.mubr.f32.mxu0 0.0
      %519 = vmatmul.mubr.f32.gmra.mrb[0].mxu0 %v259
      %v520 = vpop.f32.mrb[0].mxu0
      %v521 = vadd.f32 %v249, %v520
      %v522 = vpop.f32.mrb[0].mxu0
      %523 = vmatprep.mubr.f32.mxu0 0.0
      %524 = vmatmul.mubr.f32.gmra.mrb[0].mxu0 %v262
      %v525 = vpop.f32.mrb[0].mxu0
      %v526 = vadd.f32 %v249, %v525
      %v527 = vpop.f32.mrb[0].mxu0
      %528 = vmatprep.mubr.f32.mxu0 0.0
      %529 = vmatmul.mubr.f32.gmra.mrb[0].mxu0 %v265
      %v530 = vpop.f32.mrb[0].mxu0
      %v531 = vadd.f32 %v249, %v530
      %v532 = vpop.f32.mrb[0].mxu0
      %533 = vmatprep.mubr.f32.mxu0 0.0
      %534 = vmatmul.mubr.f32.gmra.mrb[0].mxu0 %v268
      %v535 = vpop.f32.mrb[0].mxu0
      %v536 = vadd.f32 %v249, %v535
      %v537 = vpop.f32.mrb[0].mxu0
      %538 = vmatprep.mubr.f32.mxu0 0.0
      %539 = vmatmul.mubr.f32.gmra.mrb[0].mxu0 %v271
      %v540 = vpop.f32.mrb[0].mxu0
      %v541 = vadd.f32 %v249, %v540
      %v542 = vpop.f32.mrb[0].mxu0
      %543 = vmatprep.mubr.f32.mxu0 0.0
      %544 = vmatmul.mubr.f32.gmra.mrb[0].mxu0 %v274
      %v545 = vpop.f32.mrb[0].mxu0
      %v546 = vadd.f32 %v249, %v545
      %v547 = vpop.f32.mrb[0].mxu0
      %548 = vmatprep.mubr.f32.mxu0 0.0
      %549 = vmatmul.mubr.f32.gmra.mrb[0].mxu0 %v277
      %v550 = vpop.f32.mrb[0].mxu0
      %v551 = vadd.f32 %v249, %v550
      %v552 = vpop.f32.mrb[0].mxu0
      %553 = vmatprep.mubr.f32.mxu0 0.0
      %554 = vmatmul.mubr.f32.gmra.mrb[0].mxu0 %v280
      %v555 = vpop.f32.mrb[0].mxu0
      %v556 = vadd.f32 %v249, %v555
      %v557 = vpop.f32.mrb[0].mxu0
      %558 = vmatprep.mubr.f32.mxu0 0.0
      %559 = vmatmul.mubr.f32.gmra.mrb[0].mxu0 %v283
      %v560 = vpop.f32.mrb[0].mxu0
      %v561 = vadd.f32 %v249, %v560
      %v562 = vpop.f32.mrb[0].mxu0
      %563 = vmatprep.mubr.f32.mxu0 0.0
      %564 = vmatmul.mubr.f32.gmra.mrb[0].mxu0 %v286
      %v565 = vpop.f32.mrb[0].mxu0
      %v566 = vadd.f32 %v249, %v565
      %v567 = vpop.f32.mrb[0].mxu0
      %568 = vmatprep.mubr.f32.mxu0 0.0
      %569 = vmatmul.mubr.f32.gmra.mrb[0].mxu0 %v289
      %v570 = vpop.f32.mrb[0].mxu0
      %v571 = vadd.f32 %v249, %v570
      %v572 = vpop.f32.mrb[0].mxu0
      %573 = vmatprep.mubr.f32.mxu0 0.0
      %574 = vmatmul.mubr.f32.gmra.mrb[0].mxu0 %v292
      %v575 = vpop.f32.mrb[0].mxu0
      %v576 = vadd.f32 %v249, %v575
      %v577 = vpop.f32.mrb[0].mxu0
      %578 = vmatprep.mubr.f32.mxu0 0.0
      %579 = vmatmul.mubr.f32.gmra.mrb[0].mxu0 %v295
      %v580 = vpop.f32.mrb[0].mxu0
      %v581 = vadd.f32 %v249, %v580
      %v582 = vpop.f32.mrb[0].mxu0
      %583 = vmatprep.mubr.f32.mxu0 0.0
      %584 = vmatmul.mubr.f32.gmra.mrb[0].mxu0 %v298
      %v585 = vpop.f32.mrb[0].mxu0
      %v586 = vadd.f32 %v249, %v585
      %v587 = vpop.f32.mrb[0].mxu0
      %588 = vmatprep.mubr.f32.mxu0 0.0
      %589 = vmatmul.mubr.f32.gmra.mrb[0].mxu0 %v301
      %v590 = vpop.f32.mrb[0].mxu0
      %v591 = vadd.f32 %v249, %v590
      %v592 = vpop.f32.mrb[0].mxu0
      %593 = vmatprep.mubr.f32.mxu0 0.0
      %594 = vmatmul.mubr.f32.gmra.mrb[0].mxu0 %v304
      %v595 = vpop.f32.mrb[0].mxu0
      %v596 = vadd.f32 %v249, %v595
      %v597 = vpop.f32.mrb[0].mxu0
      %598 = vmatprep.mubr.f32.mxu0 0.0
      %599 = vmatmul.mubr.f32.gmra.mrb[0].mxu0 %v307
      %v600 = vpop.f32.mrb[0].mxu0
      %v601 = vadd.f32 %v249, %v600
      %v602 = vpop.f32.mrb[0].mxu0
      %603 = vmatprep.mubr.f32.mxu0 0.0
      %604 = vmatmul.mubr.f32.gmra.mrb[0].mxu0 %v310
      %v605 = vpop.f32.mrb[0].mxu0
      %v606 = vadd.f32 %v249, %v605
      %v607 = vpop.f32.mrb[0].mxu0
      %608 = vmatprep.mubr.f32.mxu0 0.0
      %609 = vmatmul.mubr.f32.gmra.mrb[0].mxu0 %v313
      %v610 = vpop.f32.mrb[0].mxu0
      %v611 = vadd.f32 %v249, %v610
      %v612 = vpop.f32.mrb[0].mxu0
      %613 = vmatprep.mubr.f32.mxu0 0.0
      %614 = vmatmul.mubr.f32.gmra.mrb[0].mxu0 %v316
      %v615 = vpop.f32.mrb[0].mxu0
      %v616 = vadd.f32 %v249, %v615
      %v617 = vpop.f32.mrb[0].mxu0
      %618 = vmatprep.mubr.f32.mxu0 0.0
      %619 = vmatmul.mubr.f32.gmra.mrb[0].mxu0 %v319
      %v620 = vpop.f32.mrb[0].mxu0
      %v621 = vadd.f32 %v249, %v620
      %v622 = vpop.f32.mrb[0].mxu0
      %623 = vmatprep.mubr.f32.mxu0 0.0
      %624 = vmatmul.mubr.f32.gmra.mrb[0].mxu0 %v322
      %v625 = vpop.f32.mrb[0].mxu0
      %v626 = vadd.f32 %v249, %v625
      %v627 = vpop.f32.mrb[0].mxu0
      %628 = vmatprep.mubr.f32.mxu0 0.0
      %629 = vmatmul.mubr.f32.gmra.mrb[0].mxu0 %v325
      %v630 = vpop.f32.mrb[0].mxu0
      %v631 = vadd.f32 %v249, %v630
      %v632 = vpop.f32.mrb[0].mxu0
      %633 = vmatprep.mubr.f32.mxu0 0.0
      %634 = vmatmul.mubr.f32.gmra.mrb[0].mxu0 %v328
      %v635 = vpop.f32.mrb[0].mxu0
      %v636 = vadd.f32 %v249, %v635
      %v637 = vpop.f32.mrb[0].mxu0
      %638 = vmatprep.mubr.f32.mxu0 0.0
      %639 = vmatmul.mubr.f32.gmra.mrb[0].mxu0 %v331
      %v640 = vpop.f32.mrb[0].mxu0
      %v641 = vadd.f32 %v249, %v640
      %v642 = vpop.f32.mrb[0].mxu0
      %643 = vmatprep.mubr.f32.mxu0 0.0
      %644 = vmatmul.mubr.f32.gmra.mrb[0].mxu0 %v334
      %v645 = vpop.f32.mrb[0].mxu0
      %v646 = vadd.f32 %v249, %v645
      %v647 = vpop.f32.mrb[0].mxu0
      %648 = vmatprep.mubr.f32.mxu0 0.0
      %649 = vmatmul.mubr.f32.gmra.mrb[0].mxu0 %v337
      %v650 = vpop.f32.mrb[0].mxu0
      %v651 = vadd.f32 %v249, %v650
      %v652 = vpop.f32.mrb[0].mxu0
      %653 = vmatprep.mubr.f32.mxu0 0.0
      %654 = vmatmul.mubr.f32.gmra.mrb[0].mxu0 %v340
      %v655 = vpop.f32.mrb[0].mxu0
      %v656 = vadd.f32 %v249, %v655
      %v657 = vpop.f32.mrb[0].mxu0
      %658 = vmatprep.mubr.f32.mxu0 0.0
      %659 = vmatmul.mubr.f32.gmra.mrb[0].mxu0 %v343
      %v660 = vpop.f32.mrb[0].mxu0
      %v661 = vadd.f32 %v249, %v660
      %v662 = vpop.f32.mrb[0].mxu0
      %663 = vmatprep.mubr.f32.mxu0 0.0
      %664 = vmatmul.mubr.f32.gmra.mrb[0].mxu0 %v346
      %v665 = vpop.f32.mrb[0].mxu0
      %v666 = vadd.f32 %v249, %v665
      %v667 = vpop.f32.mrb[0].mxu0
      %668 = vmatprep.mubr.f32.mxu0 0.0
      %669 = vmatmul.mubr.f32.gmra.mrb[0].mxu0 %v349
      %v670 = vpop.f32.mrb[0].mxu0
      %v671 = vadd.f32 %v249, %v670
      %v672 = vpop.f32.mrb[0].mxu0
      %673 = vmatprep.mubr.f32.mxu0 0.0
      %674 = vmatmul.mubr.f32.gmra.mrb[0].mxu0 %v352
      %v675 = vpop.f32.mrb[0].mxu0
      %v676 = vadd.f32 %v249, %v675
      %v677 = vpop.f32.mrb[0].mxu0
      %678 = vmatprep.mubr.f32.mxu0 0.0
      %679 = vmatmul.mubr.f32.gmra.mrb[0].mxu0 %v355
      %v680 = vpop.f32.mrb[0].mxu0
      %v681 = vadd.f32 %v249, %v680
      %v682 = vpop.f32.mrb[0].mxu0
      %683 = vmatprep.mubr.f32.mxu0 0.0
      %684 = vmatmul.mubr.f32.gmra.mrb[0].mxu0 %v358
      %v685 = vpop.f32.mrb[0].mxu0
      %v686 = vadd.f32 %v249, %v685
      %v687 = vpop.f32.mrb[0].mxu0
      %688 = vmatprep.mubr.f32.mxu0 0.0
      %689 = vmatmul.mubr.f32.gmra.mrb[0].mxu0 %v361
      %v690 = vpop.f32.mrb[0].mxu0
      %v691 = vadd.f32 %v249, %v690
      %v692 = vpop.f32.mrb[0].mxu0
      %693 = vmatprep.mubr.f32.mxu0 0.0
      %694 = vmatmul.mubr.f32.gmra.mrb[0].mxu0 %v364
      %v695 = vpop.f32.mrb[0].mxu0
      %v696 = vadd.f32 %v249, %v695
      %v697 = vpop.f32.mrb[0].mxu0
      %698 = vmatprep.mubr.f32.mxu0 0.0
      %699 = vmatmul.mubr.f32.gmra.mrb[0].mxu0 %v367
      %v700 = vpop.f32.mrb[0].mxu0
      %v701 = vadd.f32 %v249, %v700
      %v702 = vpop.f32.mrb[0].mxu0
      %703 = vmatprep.mubr.f32.mxu0 0.0
      %704 = vmatmul.mubr.f32.gmra.mrb[0].mxu0 %v370
      %v705 = vpop.f32.mrb[0].mxu0
      %v706 = vadd.f32 %v249, %v705
      %v707 = vpop.f32.mrb[0].mxu0
      %708 = vmatprep.mubr.f32.mxu0 0.0
      %709 = vmatmul.mubr.f32.gmra.mrb[0].mxu0 %v373
      %v710 = vpop.f32.mrb[0].mxu0
      %v711 = vadd.f32 %v249, %v710
      %v712 = vpop.f32.mrb[0].mxu0
      %713 = vmatprep.mubr.f32.mxu0 0.0
      %714 = vmatmul.mubr.f32.gmra.mrb[0].mxu0 %v376
      %v715 = vpop.f32.mrb[0].mxu0
      %v716 = vadd.f32 %v249, %v715
      %v717 = vpop.f32.mrb[0].mxu0
      %718 = vmatprep.mubr.f32.mxu0 0.0
      %719 = vmatmul.mubr.f32.gmra.mrb[0].mxu0 %v379
      %v720 = vpop.f32.mrb[0].mxu0
      %v721 = vadd.f32 %v249, %v720
      %v722 = vpop.f32.mrb[0].mxu0
      %723 = vmatprep.mubr.f32.mxu0 0.0
      %724 = vmatmul.mubr.f32.gmra.mrb[0].mxu0 %v382
      %v725 = vpop.f32.mrb[0].mxu0
      %v726 = vadd.f32 %v249, %v725
      %v727 = vpop.f32.mrb[0].mxu0
      %728 = vmatprep.mubr.f32.mxu0 0.0
      %729 = vmatmul.mubr.f32.gmra.mrb[0].mxu0 %v385
      %v730 = vpop.f32.mrb[0].mxu0
      %v731 = vadd.f32 %v249, %v730
      %v732 = vpop.f32.mrb[0].mxu0
      %733 = vmatprep.mubr.f32.mxu0 0.0
      %734 = vmatmul.mubr.f32.gmra.mrb[0].mxu0 %v388
      %v735 = vpop.f32.mrb[0].mxu0
      %v736 = vadd.f32 %v249, %v735
      %v737 = vpop.f32.mrb[0].mxu0
      %738 = vmatprep.mubr.f32.mxu0 0.0
      %739 = vmatmul.mubr.f32.gmra.mrb[0].mxu0 %v391
      %v740 = vpop.f32.mrb[0].mxu0
      %v741 = vadd.f32 %v249, %v740
      %v742 = vpop.f32.mrb[0].mxu0
      %743 = vmatprep.mubr.f32.mxu0 0.0
      %744 = vmatmul.mubr.f32.gmra.mrb[0].mxu0 %v394
      %v745 = vpop.f32.mrb[0].mxu0
      %v746 = vadd.f32 %v249, %v745
      %v747 = vpop.f32.mrb[0].mxu0
      %748 = vmatprep.mubr.f32.mxu0 0.0
      %749 = vmatmul.mubr.f32.gmra.mrb[0].mxu0 %v397
      %v750 = vpop.f32.mrb[0].mxu0
      %v751 = vadd.f32 %v249, %v750
      %v752 = vpop.f32.mrb[0].mxu0
      %753 = vmatprep.mubr.f32.mxu0 0.0
      %754 = vmatmul.mubr.f32.gmra.mrb[0].mxu0 %v400
      %v755 = vpop.f32.mrb[0].mxu0
      %v756 = vadd.f32 %v249, %v755
      %v757 = vpop.f32.mrb[0].mxu0
      %758 = vmatprep.mubr.f32.mxu0 0.0
      %759 = vmatmul.mubr.f32.gmra.mrb[0].mxu0 %v403
      %v760 = vpop.f32.mrb[0].mxu0
      %v761 = vadd.f32 %v249, %v760
      %v762 = vpop.f32.mrb[0].mxu0
      %763 = vmatprep.mubr.f32.mxu0 0.0
      %764 = vmatmul.mubr.f32.gmra.mrb[0].mxu0 %v406
      %v765 = vpop.f32.mrb[0].mxu0
      %v766 = vadd.f32 %v249, %v765
      %v767 = vpop.f32.mrb[0].mxu0
      %768 = vmatprep.mubr.f32.mxu0 0.0
      %769 = vmatmul.mubr.f32.gmra.mrb[0].mxu0 %v409
      %v770 = vpop.f32.mrb[0].mxu0
      %v771 = vadd.f32 %v249, %v770
      %v772 = vpop.f32.mrb[0].mxu0
      %773 = vmatprep.mubr.f32.mxu0 0.0
      %774 = vmatmul.mubr.f32.gmra.mrb[0].mxu0 %v412
      %v775 = vpop.f32.mrb[0].mxu0
      %v776 = vadd.f32 %v249, %v775
      %v777 = vpop.f32.mrb[0].mxu0
      %778 = vmatprep.mubr.f32.mxu0 0.0
      %779 = vmatmul.mubr.f32.gmra.mrb[0].mxu0 %v415
      %v780 = vpop.f32.mrb[0].mxu0
      %v781 = vadd.f32 %v249, %v780
      %v782 = vpop.f32.mrb[0].mxu0
      %783 = vmatprep.mubr.f32.mxu0 0.0
      %784 = vmatmul.mubr.f32.gmra.mrb[0].mxu0 %v418
      %v785 = vpop.f32.mrb[0].mxu0
      %v786 = vadd.f32 %v249, %v785
      %v787 = vpop.f32.mrb[0].mxu0
      %788 = vmatprep.mubr.f32.mxu0 0.0
      %789 = vmatmul.mubr.f32.gmra.mrb[0].mxu0 %v421
      %v790 = vpop.f32.mrb[0].mxu0
      %v791 = vadd.f32 %v249, %v790
      %v792 = vpop.f32.mrb[0].mxu0
      %793 = vmatprep.mubr.f32.mxu0 0.0
      %794 = vmatmul.mubr.f32.gmra.mrb[0].mxu0 %v424
      %v795 = vpop.f32.mrb[0].mxu0
      %v796 = vadd.f32 %v249, %v795
      %v797 = vpop.f32.mrb[0].mxu0
      %798 = vmatprep.mubr.f32.mxu0 0.0
      %799 = vmatmul.mubr.f32.gmra.mrb[0].mxu0 %v427
      %v800 = vpop.f32.mrb[0].mxu0
      %v801 = vadd.f32 %v249, %v800
      %v802 = vpop.f32.mrb[0].mxu0
      %803 = vmatprep.mubr.f32.mxu0 0.0
      %804 = vmatmul.mubr.f32.gmra.mrb[0].mxu0 %v430
      %v805 = vpop.f32.mrb[0].mxu0
      %v806 = vadd.f32 %v249, %v805
      %v807 = vpop.f32.mrb[0].mxu0
      %808 = vmatprep.mubr.f32.mxu0 0.0
      %809 = vmatmul.mubr.f32.gmra.mrb[0].mxu0 %v433
      %v810 = vpop.f32.mrb[0].mxu0
      %v811 = vadd.f32 %v249, %v810
      %v812 = vpop.f32.mrb[0].mxu0
      %813 = vmatprep.mubr.f32.mxu0 0.0
      %814 = vmatmul.mubr.f32.gmra.mrb[0].mxu0 %v436
      %v815 = vpop.f32.mrb[0].mxu0
      %v816 = vadd.f32 %v249, %v815
      %v817 = vpop.f32.mrb[0].mxu0
      %818 = vmatprep.mubr.f32.mxu0 0.0
      %819 = vmatmul.mubr.f32.gmra.mrb[0].mxu0 %v439
      %v820 = vpop.f32.mrb[0].mxu0
      %v821 = vadd.f32 %v249, %v820
      %v822 = vpop.f32.mrb[0].mxu0
      %823 = vmatprep.mubr.f32.mxu0 0.0
      %824 = vmatmul.mubr.f32.gmra.mrb[0].mxu0 %v442
      %v825 = vpop.f32.mrb[0].mxu0
      %v826 = vadd.f32 %v249, %v825
      %v827 = vpop.f32.mrb[0].mxu0
      %828 = vdwg.mxu0
      %v829 = vmax.f32 %v511, 0.0
      %v830 = vmax.f32 %v516, 0.0
      %v831 = vmax.f32 %v521, 0.0
      %v832 = vmax.f32 %v526, 0.0
      %v833 = vmax.f32 %v531, 0.0
      %v834 = vmax.f32 %v536, 0.0
      %v835 = vmax.f32 %v541, 0.0
      %v836 = vmax.f32 %v546, 0.0
      %v837 = vmax.f32 %v551, 0.0
      %v838 = vmax.f32 %v556, 0.0
      %v839 = vmax.f32 %v561, 0.0
      %v840 = vmax.f32 %v566, 0.0
      %v841 = vmax.f32 %v571, 0.0
      %v842 = vmax.f32 %v576, 0.0
      %v843 = vmax.f32 %v581, 0.0
      %v844 = vmax.f32 %v586, 0.0
      %v845 = vmax.f32 %v591, 0.0
      %v846 = vmax.f32 %v596, 0.0
      %v847 = vmax.f32 %v601, 0.0
      %v848 = vmax.f32 %v606, 0.0
      %v849 = vmax.f32 %v611, 0.0
      %v850 = vmax.f32 %v616, 0.0
      %v851 = vmax.f32 %v621, 0.0
      %v852 = vmax.f32 %v626, 0.0
      %v853 = vmax.f32 %v631, 0.0
      %v854 = vmax.f32 %v636, 0.0
      %v855 = vmax.f32 %v641, 0.0
      %v856 = vmax.f32 %v646, 0.0
      %v857 = vmax.f32 %v651, 0.0
      %v858 = vmax.f32 %v656, 0.0
      %v859 = vmax.f32 %v661, 0.0
      %v860 = vmax.f32 %v666, 0.0
      %v861 = vmax.f32 %v671, 0.0
      %v862 = vmax.f32 %v676, 0.0
      %v863 = vmax.f32 %v681, 0.0
      %v864 = vmax.f32 %v686, 0.0
      %v865 = vmax.f32 %v691, 0.0
      %v866 = vmax.f32 %v696, 0.0
      %v867 = vmax.f32 %v701, 0.0
      %v868 = vmax.f32 %v706, 0.0
      %v869 = vmax.f32 %v711, 0.0
      %v870 = vmax.f32 %v716, 0.0
      %v871 = vmax.f32 %v721, 0.0
      %v872 = vmax.f32 %v726, 0.0
      %v873 = vmax.f32 %v731, 0.0
      %v874 = vmax.f32 %v736, 0.0
      %v875 = vmax.f32 %v741, 0.0
      %v876 = vmax.f32 %v746, 0.0
      %v877 = vmax.f32 %v751, 0.0
      %v878 = vmax.f32 %v756, 0.0
      %v879 = vmax.f32 %v761, 0.0
      %v880 = vmax.f32 %v766, 0.0
      %v881 = vmax.f32 %v771, 0.0
      %v882 = vmax.f32 %v776, 0.0
      %v883 = vmax.f32 %v781, 0.0
      %v884 = vmax.f32 %v786, 0.0
      %v885 = vmax.f32 %v791, 0.0
      %v886 = vmax.f32 %v796, 0.0
      %v887 = vmax.f32 %v801, 0.0
      %v888 = vmax.f32 %v806, 0.0
      %v889 = vmax.f32 %v811, 0.0
      %v890 = vmax.f32 %v816, 0.0
      %v891 = vmax.f32 %v821, 0.0
      %v892 = vmax.f32 %v826, 0.0
      %vm893 = vcmask 261120
      %v894 = vsel %vm893, %v829, -inf
      %v895 = vsel %vm893, %v830, -inf
      %v896 = vmax.f32 %v894, %v895
      %v897 = vsel %vm893, %v831, -inf
      %v898 = vmax.f32 %v896, %v897
      %v899 = vsel %vm893, %v832, -inf
      %v900 = vmax.f32 %v898, %v899
      %v901 = vrot.slane %v900, 4
      %v902 = vmax.f32 %v900, %v901
      %v903 = vrot.slane %v902, 2
      %v904 = vmax.f32 %v902, %v903
      %v905 = vrot.slane %v904, 1
      %v906 = vmax.f32 %v904, %v905
      %v907 = vsel %vm893, %v833, -inf
      %v908 = vsel %vm893, %v834, -inf
      %v909 = vmax.f32 %v907, %v908
      %v910 = vsel %vm893, %v835, -inf
      %v911 = vmax.f32 %v909, %v910
      %v912 = vsel %vm893, %v836, -inf
      %v913 = vmax.f32 %v911, %v912
      %v914 = vrot.slane %v913, 4
      %v915 = vmax.f32 %v913, %v914
      %v916 = vrot.slane %v915, 2
      %v917 = vmax.f32 %v915, %v916
      %v918 = vrot.slane %v917, 1
      %v919 = vmax.f32 %v917, %v918
      %v920 = vsel %vm893, %v837, -inf
      %v921 = vsel %vm893, %v838, -inf
      %v922 = vmax.f32 %v920, %v921
      %v923 = vsel %vm893, %v839, -inf
      %v924 = vmax.f32 %v922, %v923
      %v925 = vsel %vm893, %v840, -inf
      %v926 = vmax.f32 %v924, %v925
      %v927 = vrot.slane %v926, 4
      %v928 = vmax.f32 %v926, %v927
      %v929 = vrot.slane %v928, 2
      %v930 = vmax.f32 %v928, %v929
      %v931 = vrot.slane %v930, 1
      %v932 = vmax.f32 %v930, %v931
      %v933 = vsel %vm893, %v841, -inf
      %v934 = vsel %vm893, %v842, -inf
      %v935 = vmax.f32 %v933, %v934
      %v936 = vsel %vm893, %v843, -inf
      %v937 = vmax.f32 %v935, %v936
      %v938 = vsel %vm893, %v844, -inf
      %v939 = vmax.f32 %v937, %v938
      %v940 = vrot.slane %v939, 4
      %v941 = vmax.f32 %v939, %v940
      %v942 = vrot.slane %v941, 2
      %v943 = vmax.f32 %v941, %v942
      %v944 = vrot.slane %v943, 1
      %v945 = vmax.f32 %v943, %v944
      %v946 = vsel %vm893, %v845, -inf
      %v947 = vsel %vm893, %v846, -inf
      %v948 = vmax.f32 %v946, %v947
      %v949 = vsel %vm893, %v847, -inf
      %v950 = vmax.f32 %v948, %v949
      %v951 = vsel %vm893, %v848, -inf
      %v952 = vmax.f32 %v950, %v951
      %v953 = vrot.slane %v952, 4
      %v954 = vmax.f32 %v952, %v953
      %v955 = vrot.slane %v954, 2
      %v956 = vmax.f32 %v954, %v955
      %v957 = vrot.slane %v956, 1
      %v958 = vmax.f32 %v956, %v957
      %v959 = vsel %vm893, %v849, -inf
      %v960 = vsel %vm893, %v850, -inf
      %v961 = vmax.f32 %v959, %v960
      %v962 = vsel %vm893, %v851, -inf
      %v963 = vmax.f32 %v961, %v962
      %v964 = vsel %vm893, %v852, -inf
      %v965 = vmax.f32 %v963, %v964
      %v966 = vrot.slane %v965, 4
      %v967 = vmax.f32 %v965, %v966
      %v968 = vrot.slane %v967, 2
      %v969 = vmax.f32 %v967, %v968
      %v970 = vrot.slane %v969, 1
      %v971 = vmax.f32 %v969, %v970
      %v972 = vsel %vm893, %v853, -inf
      %v973 = vsel %vm893, %v854, -inf
      %v974 = vmax.f32 %v972, %v973
      %v975 = vsel %vm893, %v855, -inf
      %v976 = vmax.f32 %v974, %v975
      %v977 = vsel %vm893, %v856, -inf
      %v978 = vmax.f32 %v976, %v977
      %v979 = vrot.slane %v978, 4
      %v980 = vmax.f32 %v978, %v979
      %v981 = vrot.slane %v980, 2
      %v982 = vmax.f32 %v980, %v981
      %v983 = vrot.slane %v982, 1
      %v984 = vmax.f32 %v982, %v983
      %v985 = vsel %vm893, %v857, -inf
      %v986 = vsel %vm893, %v858, -inf
      %v987 = vmax.f32 %v985, %v986
      %v988 = vsel %vm893, %v859, -inf
      %v989 = vmax.f32 %v987, %v988
      %v990 = vsel %vm893, %v860, -inf
      %v991 = vmax.f32 %v989, %v990
      %v992 = vrot.slane %v991, 4
      %v993 = vmax.f32 %v991, %v992
      %v994 = vrot.slane %v993, 2
      %v995 = vmax.f32 %v993, %v994
      %v996 = vrot.slane %v995, 1
      %v997 = vmax.f32 %v995, %v996
      %v998 = vsel %vm893, %v861, -inf
      %v999 = vsel %vm893, %v862, -inf
      %v1000 = vmax.f32 %v998, %v999
      %v1001 = vsel %vm893, %v863, -inf
      %v1002 = vmax.f32 %v1000, %v1001
      %v1003 = vsel %vm893, %v864, -inf
      %v1004 = vmax.f32 %v1002, %v1003
      %v1005 = vrot.slane %v1004, 4
      %v1006 = vmax.f32 %v1004, %v1005
      %v1007 = vrot.slane %v1006, 2
      %v1008 = vmax.f32 %v1006, %v1007
      %v1009 = vrot.slane %v1008, 1
      %v1010 = vmax.f32 %v1008, %v1009
      %v1011 = vsel %vm893, %v865, -inf
      %v1012 = vsel %vm893, %v866, -inf
      %v1013 = vmax.f32 %v1011, %v1012
      %v1014 = vsel %vm893, %v867, -inf
      %v1015 = vmax.f32 %v1013, %v1014
      %v1016 = vsel %vm893, %v868, -inf
      %v1017 = vmax.f32 %v1015, %v1016
      %v1018 = vrot.slane %v1017, 4
      %v1019 = vmax.f32 %v1017, %v1018
      %v1020 = vrot.slane %v1019, 2
      %v1021 = vmax.f32 %v1019, %v1020
      %v1022 = vrot.slane %v1021, 1
      %v1023 = vmax.f32 %v1021, %v1022
      %v1024 = vsel %vm893, %v869, -inf
      %v1025 = vsel %vm893, %v870, -inf
      %v1026 = vmax.f32 %v1024, %v1025
      %v1027 = vsel %vm893, %v871, -inf
      %v1028 = vmax.f32 %v1026, %v1027
      %v1029 = vsel %vm893, %v872, -inf
      %v1030 = vmax.f32 %v1028, %v1029
      %v1031 = vrot.slane %v1030, 4
      %v1032 = vmax.f32 %v1030, %v1031
      %v1033 = vrot.slane %v1032, 2
      %v1034 = vmax.f32 %v1032, %v1033
      %v1035 = vrot.slane %v1034, 1
      %v1036 = vmax.f32 %v1034, %v1035
      %v1037 = vsel %vm893, %v873, -inf
      %v1038 = vsel %vm893, %v874, -inf
      %v1039 = vmax.f32 %v1037, %v1038
      %v1040 = vsel %vm893, %v875, -inf
      %v1041 = vmax.f32 %v1039, %v1040
      %v1042 = vsel %vm893, %v876, -inf
      %v1043 = vmax.f32 %v1041, %v1042
      %v1044 = vrot.slane %v1043, 4
      %v1045 = vmax.f32 %v1043, %v1044
      %v1046 = vrot.slane %v1045, 2
      %v1047 = vmax.f32 %v1045, %v1046
      %v1048 = vrot.slane %v1047, 1
      %v1049 = vmax.f32 %v1047, %v1048
      %v1050 = vsel %vm893, %v877, -inf
      %v1051 = vsel %vm893, %v878, -inf
      %v1052 = vmax.f32 %v1050, %v1051
      %v1053 = vsel %vm893, %v879, -inf
      %v1054 = vmax.f32 %v1052, %v1053
      %v1055 = vsel %vm893, %v880, -inf
      %v1056 = vmax.f32 %v1054, %v1055
      %v1057 = vrot.slane %v1056, 4
      %v1058 = vmax.f32 %v1056, %v1057
      %v1059 = vrot.slane %v1058, 2
      %v1060 = vmax.f32 %v1058, %v1059
      %v1061 = vrot.slane %v1060, 1
      %v1062 = vmax.f32 %v1060, %v1061
      %v1063 = vsel %vm893, %v881, -inf
      %v1064 = vsel %vm893, %v882, -inf
      %v1065 = vmax.f32 %v1063, %v1064
      %v1066 = vsel %vm893, %v883, -inf
      %v1067 = vmax.f32 %v1065, %v1066
      %v1068 = vsel %vm893, %v884, -inf
      %v1069 = vmax.f32 %v1067, %v1068
      %v1070 = vrot.slane %v1069, 4
      %v1071 = vmax.f32 %v1069, %v1070
      %v1072 = vrot.slane %v1071, 2
      %v1073 = vmax.f32 %v1071, %v1072
      %v1074 = vrot.slane %v1073, 1
      %v1075 = vmax.f32 %v1073, %v1074
      %v1076 = vsel %vm893, %v885, -inf
      %v1077 = vsel %vm893, %v886, -inf
      %v1078 = vmax.f32 %v1076, %v1077
      %v1079 = vsel %vm893, %v887, -inf
      %v1080 = vmax.f32 %v1078, %v1079
      %v1081 = vsel %vm893, %v888, -inf
      %v1082 = vmax.f32 %v1080, %v1081
      %v1083 = vrot.slane %v1082, 4
      %v1084 = vmax.f32 %v1082, %v1083
      %v1085 = vrot.slane %v1084, 2
      %v1086 = vmax.f32 %v1084, %v1085
      %v1087 = vrot.slane %v1086, 1
      %v1088 = vmax.f32 %v1086, %v1087
      %v1089 = vsel %vm893, %v889, -inf
      %v1090 = vsel %vm893, %v890, -inf
      %v1091 = vmax.f32 %v1089, %v1090
      %v1092 = vsel %vm893, %v891, -inf
      %v1093 = vmax.f32 %v1091, %v1092
      %v1094 = vsel %vm893, %v892, -inf
      %v1095 = vmax.f32 %v1093, %v1094
      %v1096 = vrot.slane %v1095, 4
      %v1097 = vmax.f32 %v1095, %v1096
      %v1098 = vrot.slane %v1097, 2
      %v1099 = vmax.f32 %v1097, %v1098
      %v1100 = vrot.slane %v1099, 1
      %v1101 = vmax.f32 %v1099, %v1100
      %1102 = vst.msk [vmem:[%s177] sm:$0xff] %vm893, %v829
      %1103 = vst.msk [vmem:[%s177 + $0x8] sm:$0xff] %vm893, %v830
      %1104 = vst.msk [vmem:[%s177 + $0x10] sm:$0xff] %vm893, %v831
      %1105 = vst.msk [vmem:[%s177 + $0x18] sm:$0xff] %vm893, %v832
      %1106 = vst.msk [vmem:[%s177 + $0x20] sm:$0xff] %vm893, %v833
      %1107 = vst.msk [vmem:[%s177 + $0x28] sm:$0xff] %vm893, %v834
      %1108 = vst.msk [vmem:[%s177 + $0x30] sm:$0xff] %vm893, %v835
      %1109 = vst.msk [vmem:[%s177 + $0x38] sm:$0xff] %vm893, %v836
      %1110 = vst.msk [vmem:[%s177 + $0x40] sm:$0xff] %vm893, %v837
      %1111 = vst.msk [vmem:[%s177 + $0x48] sm:$0xff] %vm893, %v838
      %1112 = vst.msk [vmem:[%s177 + $0x50] sm:$0xff] %vm893, %v839
      %1113 = vst.msk [vmem:[%s177 + $0x58] sm:$0xff] %vm893, %v840
      %1114 = vst.msk [vmem:[%s177 + $0x60] sm:$0xff] %vm893, %v841
      %1115 = vst.msk [vmem:[%s177 + $0x68] sm:$0xff] %vm893, %v842
      %1116 = vst.msk [vmem:[%s177 + $0x70] sm:$0xff] %vm893, %v843
      %1117 = vst.msk [vmem:[%s177 + $0x78] sm:$0xff] %vm893, %v844
      %1118 = vst.msk [vmem:[%s177 + $0x80] sm:$0xff] %vm893, %v845
      %1119 = vst.msk [vmem:[%s177 + $0x88] sm:$0xff] %vm893, %v846
      %1120 = vst.msk [vmem:[%s177 + $0x90] sm:$0xff] %vm893, %v847
      %1121 = vst.msk [vmem:[%s177 + $0x98] sm:$0xff] %vm893, %v848
      %1122 = vst.msk [vmem:[%s177 + $0xa0] sm:$0xff] %vm893, %v849
      %1123 = vst.msk [vmem:[%s177 + $0xa8] sm:$0xff] %vm893, %v850
      %1124 = vst.msk [vmem:[%s177 + $0xb0] sm:$0xff] %vm893, %v851
      %1125 = vst.msk [vmem:[%s177 + $0xb8] sm:$0xff] %vm893, %v852
      %1126 = vst.msk [vmem:[%s177 + $0xc0] sm:$0xff] %vm893, %v853
      %1127 = vst.msk [vmem:[%s177 + $0xc8] sm:$0xff] %vm893, %v854
      %1128 = vst.msk [vmem:[%s177 + $0xd0] sm:$0xff] %vm893, %v855
      %1129 = vst.msk [vmem:[%s177 + $0xd8] sm:$0xff] %vm893, %v856
      %1130 = vst.msk [vmem:[%s177 + $0xe0] sm:$0xff] %vm893, %v857
      %1131 = vst.msk [vmem:[%s177 + $0xe8] sm:$0xff] %vm893, %v858
      %1132 = vst.msk [vmem:[%s177 + $0xf0] sm:$0xff] %vm893, %v859
      %1133 = vst.msk [vmem:[%s177 + $0xf8] sm:$0xff] %vm893, %v860
      %1134 = vst.msk [vmem:[%s177 + $0x100] sm:$0xff] %vm893, %v861
      %1135 = vst.msk [vmem:[%s177 + $0x108] sm:$0xff] %vm893, %v862
      %1136 = vst.msk [vmem:[%s177 + $0x110] sm:$0xff] %vm893, %v863
      %1137 = vst.msk [vmem:[%s177 + $0x118] sm:$0xff] %vm893, %v864
      %1138 = vst.msk [vmem:[%s177 + $0x120] sm:$0xff] %vm893, %v865
      %1139 = vst.msk [vmem:[%s177 + $0x128] sm:$0xff] %vm893, %v866
      %1140 = vst.msk [vmem:[%s177 + $0x130] sm:$0xff] %vm893, %v867
      %1141 = vst.msk [vmem:[%s177 + $0x138] sm:$0xff] %vm893, %v868
      %1142 = vst.msk [vmem:[%s177 + $0x140] sm:$0xff] %vm893, %v869
      %1143 = vst.msk [vmem:[%s177 + $0x148] sm:$0xff] %vm893, %v870
      %1144 = vst.msk [vmem:[%s177 + $0x150] sm:$0xff] %vm893, %v871
      %1145 = vst.msk [vmem:[%s177 + $0x158] sm:$0xff] %vm893, %v872
      %1146 = vst.msk [vmem:[%s177 + $0x160] sm:$0xff] %vm893, %v873
      %1147 = vst.msk [vmem:[%s177 + $0x168] sm:$0xff] %vm893, %v874
      %1148 = vst.msk [vmem:[%s177 + $0x170] sm:$0xff] %vm893, %v875
      %1149 = vst.msk [vmem:[%s177 + $0x178] sm:$0xff] %vm893, %v876
      %1150 = vst.msk [vmem:[%s177 + $0x180] sm:$0xff] %vm893, %v877
      %1151 = vst.msk [vmem:[%s177 + $0x188] sm:$0xff] %vm893, %v878
      %1152 = vst.msk [vmem:[%s177 + $0x190] sm:$0xff] %vm893, %v879
      %1153 = vst.msk [vmem:[%s177 + $0x198] sm:$0xff] %vm893, %v880
      %1154 = vst.msk [vmem:[%s177 + $0x1a0] sm:$0xff] %vm893, %v881
      %1155 = vst.msk [vmem:[%s177 + $0x1a8] sm:$0xff] %vm893, %v882
      %1156 = vst.msk [vmem:[%s177 + $0x1b0] sm:$0xff] %vm893, %v883
      %1157 = vst.msk [vmem:[%s177 + $0x1b8] sm:$0xff] %vm893, %v884
      %1158 = vst.msk [vmem:[%s177 + $0x1c0] sm:$0xff] %vm893, %v885
      %1159 = vst.msk [vmem:[%s177 + $0x1c8] sm:$0xff] %vm893, %v886
      %1160 = vst.msk [vmem:[%s177 + $0x1d0] sm:$0xff] %vm893, %v887
      %1161 = vst.msk [vmem:[%s177 + $0x1d8] sm:$0xff] %vm893, %v888
      %1162 = vst.msk [vmem:[%s177 + $0x1e0] sm:$0xff] %vm893, %v889
      %1163 = vst.msk [vmem:[%s177 + $0x1e8] sm:$0xff] %vm893, %v890
      %1164 = vst.msk [vmem:[%s177 + $0x1f0] sm:$0xff] %vm893, %v891
      %1165 = vst.msk [vmem:[%s177 + $0x1f8] sm:$0xff] %vm893, %v892
      %1182 = vrot.lane.b32.xlu0 %v906, 32
      %v1183 = vpop.permute.xlu0 %1182
      %1184 = vrot.lane.b32.xlu0 %v919, 32
      %v1185 = vpop.permute.xlu0 %1184
      %1186 = vrot.lane.b32.xlu0 %v932, 32
      %v1187 = vpop.permute.xlu0 %1186
      %1188 = vrot.lane.b32.xlu0 %v945, 32
      %v1189 = vpop.permute.xlu0 %1188
      %1190 = vrot.lane.b32.xlu0 %v958, 32
      %v1191 = vpop.permute.xlu0 %1190
      %1192 = vrot.lane.b32.xlu0 %v971, 32
      %v1193 = vpop.permute.xlu0 %1192
      %1194 = vrot.lane.b32.xlu0 %v984, 32
      %v1195 = vpop.permute.xlu0 %1194
      %1196 = vrot.lane.b32.xlu0 %v997, 32
      %v1197 = vpop.permute.xlu0 %1196
      %1198 = vrot.lane.b32.xlu0 %v1010, 32
      %v1199 = vpop.permute.xlu0 %1198
      %1200 = vrot.lane.b32.xlu0 %v1023, 32
      %v1201 = vpop.permute.xlu0 %1200
      %1202 = vrot.lane.b32.xlu0 %v1036, 32
      %v1203 = vpop.permute.xlu0 %1202
      %1204 = vrot.lane.b32.xlu0 %v1049, 32
      %v1205 = vpop.permute.xlu0 %1204
      %1206 = vrot.lane.b32.xlu0 %v1062, 32
      %v1207 = vpop.permute.xlu0 %1206
      %1208 = vrot.lane.b32.xlu0 %v1075, 32
      %v1209 = vpop.permute.xlu0 %1208
      %1210 = vrot.lane.b32.xlu0 %v1088, 32
      %v1211 = vpop.permute.xlu0 %1210
      %1212 = vrot.lane.b32.xlu0 %v1101, 32
      %v1213 = vpop.permute.xlu0 %1212
      %vm1230 = vcmask 523520
      %1231 = vst.msk [vmem:[%s177] sm:$0xff] %vm1230, %v1183
      %1232 = vst.msk [vmem:[%s177 + $0x8] sm:$0xff] %vm1230, %v1183
      %1233 = vst.msk [vmem:[%s177 + $0x10] sm:$0xff] %vm1230, %v1183
      %1234 = vst.msk [vmem:[%s177 + $0x18] sm:$0xff] %vm1230, %v1183
      %1235 = vst.msk [vmem:[%s177 + $0x20] sm:$0xff] %vm1230, %v1185
      %1236 = vst.msk [vmem:[%s177 + $0x28] sm:$0xff] %vm1230, %v1185
      %1237 = vst.msk [vmem:[%s177 + $0x30] sm:$0xff] %vm1230, %v1185
      %1238 = vst.msk [vmem:[%s177 + $0x38] sm:$0xff] %vm1230, %v1185
      %1239 = vst.msk [vmem:[%s177 + $0x40] sm:$0xff] %vm1230, %v1187
      %1240 = vst.msk [vmem:[%s177 + $0x48] sm:$0xff] %vm1230, %v1187
      %1241 = vst.msk [vmem:[%s177 + $0x50] sm:$0xff] %vm1230, %v1187
      %1242 = vst.msk [vmem:[%s177 + $0x58] sm:$0xff] %vm1230, %v1187
      %1243 = vst.msk [vmem:[%s177 + $0x60] sm:$0xff] %vm1230, %v1189
      %1244 = vst.msk [vmem:[%s177 + $0x68] sm:$0xff] %vm1230, %v1189
      %1245 = vst.msk [vmem:[%s177 + $0x70] sm:$0xff] %vm1230, %v1189
      %1246 = vst.msk [vmem:[%s177 + $0x78] sm:$0xff] %vm1230, %v1189
      %1247 = vst.msk [vmem:[%s177 + $0x80] sm:$0xff] %vm1230, %v1191
      %1248 = vst.msk [vmem:[%s177 + $0x88] sm:$0xff] %vm1230, %v1191
      %1249 = vst.msk [vmem:[%s177 + $0x90] sm:$0xff] %vm1230, %v1191
      %1250 = vst.msk [vmem:[%s177 + $0x98] sm:$0xff] %vm1230, %v1191
      %1251 = vst.msk [vmem:[%s177 + $0xa0] sm:$0xff] %vm1230, %v1193
      %1252 = vst.msk [vmem:[%s177 + $0xa8] sm:$0xff] %vm1230, %v1193
      %1253 = vst.msk [vmem:[%s177 + $0xb0] sm:$0xff] %vm1230, %v1193
      %1254 = vst.msk [vmem:[%s177 + $0xb8] sm:$0xff] %vm1230, %v1193
      %1255 = vst.msk [vmem:[%s177 + $0xc0] sm:$0xff] %vm1230, %v1195
      %1256 = vst.msk [vmem:[%s177 + $0xc8] sm:$0xff] %vm1230, %v1195
      %1257 = vst.msk [vmem:[%s177 + $0xd0] sm:$0xff] %vm1230, %v1195
      %1258 = vst.msk [vmem:[%s177 + $0xd8] sm:$0xff] %vm1230, %v1195
      %1259 = vst.msk [vmem:[%s177 + $0xe0] sm:$0xff] %vm1230, %v1197
      %1260 = vst.msk [vmem:[%s177 + $0xe8] sm:$0xff] %vm1230, %v1197
      %1261 = vst.msk [vmem:[%s177 + $0xf0] sm:$0xff] %vm1230, %v1197
      %1262 = vst.msk [vmem:[%s177 + $0xf8] sm:$0xff] %vm1230, %v1197
      %1263 = vst.msk [vmem:[%s177 + $0x100] sm:$0xff] %vm1230, %v1199
      %1264 = vst.msk [vmem:[%s177 + $0x108] sm:$0xff] %vm1230, %v1199
      %1265 = vst.msk [vmem:[%s177 + $0x110] sm:$0xff] %vm1230, %v1199
      %1266 = vst.msk [vmem:[%s177 + $0x118] sm:$0xff] %vm1230, %v1199
      %1267 = vst.msk [vmem:[%s177 + $0x120] sm:$0xff] %vm1230, %v1201
      %1268 = vst.msk [vmem:[%s177 + $0x128] sm:$0xff] %vm1230, %v1201
      %1269 = vst.msk [vmem:[%s177 + $0x130] sm:$0xff] %vm1230, %v1201
      %1270 = vst.msk [vmem:[%s177 + $0x138] sm:$0xff] %vm1230, %v1201
      %1271 = vst.msk [vmem:[%s177 + $0x140] sm:$0xff] %vm1230, %v1203
      %1272 = vst.msk [vmem:[%s177 + $0x148] sm:$0xff] %vm1230, %v1203
      %1273 = vst.msk [vmem:[%s177 + $0x150] sm:$0xff] %vm1230, %v1203
      %1274 = vst.msk [vmem:[%s177 + $0x158] sm:$0xff] %vm1230, %v1203
      %1275 = vst.msk [vmem:[%s177 + $0x160] sm:$0xff] %vm1230, %v1205
      %1276 = vst.msk [vmem:[%s177 + $0x168] sm:$0xff] %vm1230, %v1205
      %1277 = vst.msk [vmem:[%s177 + $0x170] sm:$0xff] %vm1230, %v1205
      %1278 = vst.msk [vmem:[%s177 + $0x178] sm:$0xff] %vm1230, %v1205
      %1279 = vst.msk [vmem:[%s177 + $0x180] sm:$0xff] %vm1230, %v1207
      %1280 = vst.msk [vmem:[%s177 + $0x188] sm:$0xff] %vm1230, %v1207
      %1281 = vst.msk [vmem:[%s177 + $0x190] sm:$0xff] %vm1230, %v1207
      %1282 = vst.msk [vmem:[%s177 + $0x198] sm:$0xff] %vm1230, %v1207
      %1283 = vst.msk [vmem:[%s177 + $0x1a0] sm:$0xff] %vm1230, %v1209
      %1284 = vst.msk [vmem:[%s177 + $0x1a8] sm:$0xff] %vm1230, %v1209
      %1285 = vst.msk [vmem:[%s177 + $0x1b0] sm:$0xff] %vm1230, %v1209
      %1286 = vst.msk [vmem:[%s177 + $0x1b8] sm:$0xff] %vm1230, %v1209
      %1287 = vst.msk [vmem:[%s177 + $0x1c0] sm:$0xff] %vm1230, %v1211
      %1288 = vst.msk [vmem:[%s177 + $0x1c8] sm:$0xff] %vm1230, %v1211
      %1289 = vst.msk [vmem:[%s177 + $0x1d0] sm:$0xff] %vm1230, %v1211
      %1290 = vst.msk [vmem:[%s177 + $0x1d8] sm:$0xff] %vm1230, %v1211
      %1291 = vst.msk [vmem:[%s177 + $0x1e0] sm:$0xff] %vm1230, %v1213
      %1292 = vst.msk [vmem:[%s177 + $0x1e8] sm:$0xff] %vm1230, %v1213
      %1293 = vst.msk [vmem:[%s177 + $0x1f0] sm:$0xff] %vm1230, %v1213
      %1294 = vst.msk [vmem:[%s177 + $0x1f8] sm:$0xff] %vm1230, %v1213
      %s1295 = smul.u32 16, %s14
      %p1296 = scmp.lt.s32.totalorder %s1295, 47
      %s1297 = scalar_select %p1296, %s1295, 47
      %s1298 = smul.addr %s1297, 4
      %s1299 = smul.addr %s1298, 8
      %s1300 = scalar_lea.vmem %s3, %s1299
      // Predicated region
      $region33: #{pfn_layer.1} parent=31 // pred_check
        %p1301 = pneg %p100
      $region34: #{pfn_layer.1} parent=31 // pred_check_branch
        %1303 = sbr.rel (%p1301) target = $region36
      $region35: #{pfn_layer.1} parent=31 // pred_region
        %s1304 = smul.u32 16, %s14
      $region36: #{pfn_layer.1} parent=31 // pred_fallthru
        _
    $region32: #{pfn_layer.1} parent=5 // pred_fallthru
      _
    %p1305 = scmp.le.s32.totalorder 2, %s9
    // Predicated region
    $region37: #{pfn_layer.1} parent=5 // pred_check
      %p1306 = pneg %p1305
    $region38: #{pfn_layer.1} parent=5 // pred_check_branch
      %1308 = sbr.rel (%p1306) target = $region40
    $region39: #{pfn_layer.1} parent=5 // pred_region
      %s1309 = ssub.s32 %s9, 2
      // Predicated region
      $region41: #{pfn_layer.1} parent=39 // pred_check
        %p1310 = pneg %p106
      $region42: #{pfn_layer.1} parent=39 // pred_check_branch
        %1312 = sbr.rel (%p1310) target = $region44
      $region43: #{pfn_layer.1} parent=39 // pred_region
        %s1313 = smul.u32 16, %s15
        %p1314 = scmp.lt.s32.totalorder %s1313, 47
        %s1315 = scalar_select %p1314, %s1313, 47
        %s1316 = smul.addr %s1315, 4
        %s1317 = smul.addr %s1316, 8
        %s1318 = scalar_lea.vmem %s3, %s1317
      $region44: #{pfn_layer.1} parent=39 // pred_fallthru
        _
    $region40: #{pfn_layer.1} parent=5 // pred_fallthru
      _
  $region6: #{pfn_layer.1} parent=0 // loop_footer
    %s13 = sadd.s32 1, %s9
  $region7: #{pfn_layer.1} parent=0 // loop_footer_branch
    %8 = sbr.rel target = $region3
  $region8: #{pfn_layer.1} parent=0 // loop_exit
    _

</llo_original>
